<compile_context>
chip_gen: v7x
topology: tpu7x:2x2x1
jax: 0.10.0
libtpu: 0.0.40
codegen_flags: <defaults>
</compile_context>

<pallas_src>
import functools

import jax
import jax.numpy as jnp
from jax.experimental import pallas as pl
from jax.experimental.pallas import tpu as pltpu

EPS = 1e-6  # LayerNorm eps (annotated-transformer style: added to std)

# Scoped-VMEM request: above the small defaults, but leaves headroom even on
# v7x's 64 MiB physical VMEM.
_VMEM_LIMIT = 48 * 1024 * 1024


# ------------------------- small helpers -------------------------

def _round_up(n, m):
    return ((n + m - 1) // m) * m


def _pick_tile(dim, target, align):
    """Largest multiple of `align` <= target that divides round_up(dim, align)."""
    padded = _round_up(dim, align)
    t = min(_round_up(target, align), padded)
    while padded % t:
        t -= align
    return t, padded


def _pad_rows(a, rows):
    r = a.shape[0]
    return a if r == rows else jnp.pad(a, ((0, rows - r), (0, 0)))


# ------------------------- Pallas kernels -------------------------

def layernorm_kernel(x_ref, g_ref, b_ref, o_ref, *, hidden):
    x = x_ref[...].astype(jnp.float32)
    g = g_ref[...].astype(jnp.float32)   # hoisted casts / broadcasts
    b = b_ref[...].astype(jnp.float32)
    mean = jnp.mean(x, axis=-1, keepdims=True)
    diff = x - mean
    # torch.Tensor.std defaults to the UNBIASED estimator (ddof = 1).
    var = jnp.sum(diff * diff, axis=-1, keepdims=True) * (1.0 / (hidden - 1))
    inv = pl.reciprocal(jnp.sqrt(var) + EPS, approx=False)  # EUP slot, frees VPU
    o_ref[...] = (g * (diff * inv) + b).astype(o_ref.dtype)


def residual_add_kernel(x_ref, y_ref, o_ref):
    # Eval-mode dropout is identity.
    # TODO(synk): training-mode dropout would use pltpu.prng_seed/prng_random_bits.
    acc = x_ref[...].astype(jnp.float32) + y_ref[...].astype(jnp.float32)
    o_ref[...] = acc.astype(o_ref.dtype)


def linear_residual_kernel(a_ref, w_ref, bias_ref, xres_ref, o_ref, acc_ref):
    """K-tiled matmul; bias + residual fused into the epilogue (f32 accumulate)."""
    k = pl.program_id(2)

    @pl.when(k == 0)
    def _():
        acc_ref[...] = jnp.zeros_like(acc_ref)

    acc_ref[...] += jnp.dot(a_ref[...], w_ref[...],
                            preferred_element_type=jnp.float32)

    @pl.when(k == pl.num_programs(2) - 1)
    def _():
        out = (acc_ref[...]
               + bias_ref[...].astype(jnp.float32)
               + xres_ref[...].astype(jnp.float32))
        o_ref[...] = out.astype(o_ref.dtype)


def ln_linear_residual_kernel(x_ref, g_ref, b_ref, w_ref, bias_ref, xres_ref,
                              o_ref, *, hidden):
    """Fully fused: LayerNorm(x) @ W + bias + x, one pass over the (tm, H) tile."""
    x = x_ref[...].astype(jnp.float32)
    g = g_ref[...].astype(jnp.float32)
    b = b_ref[...].astype(jnp.float32)
    mean = jnp.mean(x, axis=-1, keepdims=True)
    diff = x - mean
    var = jnp.sum(diff * diff, axis=-1, keepdims=True) * (1.0 / (hidden - 1))
    inv = pl.reciprocal(jnp.sqrt(var) + EPS, approx=False)
    normed = (g * (diff * inv) + b).astype(w_ref.dtype)
    acc = jnp.dot(normed, w_ref[...], preferred_element_type=jnp.float32)
    out = acc + bias_ref[...].astype(jnp.float32) + xres_ref[...].astype(jnp.float32)
    o_ref[...] = out.astype(o_ref.dtype)


# ------------------------- Wrappers -------------------------

def layer_norm(x2d, gamma, beta, *, block_rows=512):
    M, H = x2d.shape
    br, Mp = _pick_tile(M, block_rows, 8)
    xp = _pad_rows(x2d, Mp)  # zero rows are harmless for row-wise LN
    out = pl.pallas_call(
        functools.partial(layernorm_kernel, hidden=H),
        out_shape=jax.ShapeDtypeStruct((Mp, H), x2d.dtype),
        grid_spec=pltpu.PrefetchScalarGridSpec(
            num_scalar_prefetch=0,
            grid=(Mp // br,),
            in_specs=[
                pl.BlockSpec((br, H), lambda i: (i, 0)),
                pl.BlockSpec((1, H), lambda i: (0, 0)),
                pl.BlockSpec((1, H), lambda i: (0, 0)),
            ],
            out_specs=pl.BlockSpec((br, H), lambda i: (i, 0)),
        ),
        compiler_params=pltpu.CompilerParams(
            dimension_semantics=("parallel",),
            vmem_limit_bytes=_VMEM_LIMIT),
    )(xp, gamma.reshape(1, H), beta.reshape(1, H))
    return out[:M] if Mp != M else out


def residual_add(x2d, y2d, *, block_rows=1024):
    M, H = x2d.shape
    br, Mp = _pick_tile(M, block_rows, 8)
    xp = _pad_rows(x2d, Mp)
    yp = _pad_rows(y2d.astype(x2d.dtype), Mp)
    out = pl.pallas_call(
        residual_add_kernel,
        out_shape=jax.ShapeDtypeStruct((Mp, H), x2d.dtype),
        grid_spec=pltpu.PrefetchScalarGridSpec(
            num_scalar_prefetch=0,
            grid=(Mp // br,),
            in_specs=[pl.BlockSpec((br, H), lambda i: (i, 0)),
                      pl.BlockSpec((br, H), lambda i: (i, 0))],
            out_specs=pl.BlockSpec((br, H), lambda i: (i, 0)),
        ),
        compiler_params=pltpu.CompilerParams(
            dimension_semantics=("parallel",),
            vmem_limit_bytes=_VMEM_LIMIT),
    )(xp, yp)
    return out[:M] if Mp != M else out


def linear_residual(a2d, w, bias, xres2d, *, tm=512, tn=256, tk=512):
    """out = a2d @ w + bias + xres2d, with the residual fused into the matmul."""
    M, K = a2d.shape
    K2, N = w.shape
    assert K == K2 and xres2d.shape == (M, N)
    tm, Mp = _pick_tile(M, tm, 8)
    tn, Np = _pick_tile(N, tn, 128) if N % 128 == 0 else (N, N)
    tk, Kp = _pick_tile(K, tk, 128) if K % 128 == 0 else (K, K)
    ap = jnp.pad(a2d, ((0, Mp - M), (0, Kp - K)))
    wp = jnp.pad(w, ((0, Kp - K), (0, Np - N)))
    bp = jnp.pad(bias.reshape(1, N), ((0, 0), (0, Np - N)))
    xp = jnp.pad(xres2d, ((0, Mp - M), (0, Np - N)))
    out = pl.pallas_call(
        linear_residual_kernel,
        out_shape=jax.ShapeDtypeStruct((Mp, Np), xres2d.dtype),
        grid_spec=pltpu.PrefetchScalarGridSpec(
            num_scalar_prefetch=0,
            grid=(Mp // tm, Np // tn, Kp // tk),
            in_specs=[
                pl.BlockSpec((tm, tk), lambda i, j, k: (i, k)),
                pl.BlockSpec((tk, tn), lambda i, j, k: (k, j)),
                pl.BlockSpec((1, tn), lambda i, j, k: (0, j)),
                pl.BlockSpec((tm, tn), lambda i, j, k: (i, j)),
            ],
            out_specs=pl.BlockSpec((tm, tn), lambda i, j, k: (i, j)),
            scratch_shapes=[pltpu.VMEM((tm, tn), jnp.float32)],
        ),
        compiler_params=pltpu.CompilerParams(
            dimension_semantics=("parallel", "parallel", "arbitrary"),
            vmem_limit_bytes=_VMEM_LIMIT),
    )(ap, wp, bp, xp)
    return out[:M, :N] if (Mp, Np) != (M, N) else out


def sublayer_connection_dense(x, w, bias, gamma, beta, *, tm=256):
    """Fast path for a Linear sublayer: out = x + (LayerNorm(x) @ w + bias)."""
    B, S, H = x.shape
    N = w.shape[1]
    assert N == H, "residual connection requires same hidden size"
    M = B * S
    x2d = x.reshape(M, H)
    if H > 4096:
        # LHS tile (tm, H) would pressure VMEM; fall back to 2 fused kernels.
        normed = layer_norm(x2d, gamma, beta)
        return linear_residual(normed, w, bias, x2d).reshape(B, S, N)
    tm, Mp = _pick_tile(M, tm, 8)
    tn = 256 if N % 256 == 0 else (128 if N % 128 == 0 else N)
    xp = _pad_rows(x2d, Mp)
    out = pl.pallas_call(
        functools.partial(ln_linear_residual_kernel, hidden=H),
        out_shape=jax.ShapeDtypeStruct((Mp, N), x.dtype),
        grid_spec=pltpu.PrefetchScalarGridSpec(
            num_scalar_prefetch=0,
            grid=(Mp // tm, N // tn),
            in_specs=[
                pl.BlockSpec((tm, H), lambda i, j: (i, 0)),   # x for LN (full H)
                pl.BlockSpec((1, H), lambda i, j: (0, 0)),
                pl.BlockSpec((1, H), lambda i, j: (0, 0)),
                pl.BlockSpec((H, tn), lambda i, j: (0, j)),
                pl.BlockSpec((1, tn), lambda i, j: (0, j)),
                pl.BlockSpec((tm, tn), lambda i, j: (i, j)),  # x for the residual
            ],
            out_specs=pl.BlockSpec((tm, tn), lambda i, j: (i, j)),
        ),
        compiler_params=pltpu.CompilerParams(
            dimension_semantics=("parallel", "parallel"),
            vmem_limit_bytes=_VMEM_LIMIT),
    )(xp, gamma.reshape(1, H), beta.reshape(1, H), w, bias.reshape(1, N), xp)
    out = out[:M] if Mp != M else out
    return out.reshape(B, S, N)


def sublayer_connection(x, sublayer_fn, gamma, beta, index=None):
    """Generic JAX/Pallas equivalent of SublayerConnection.forward (eval-mode dropout)."""
    B, S, H = x.shape
    x2d = x.reshape(B * S, H)
    normed = layer_norm(x2d, gamma, beta).reshape(B, S, H)
    y = sublayer_fn(normed)
    if index is not None:
        y1 = y[index]
        out = residual_add(x2d, y1.reshape(B * S, H)).reshape(B, S, H)
        return out, y[-1]
    return residual_add(x2d, y.reshape(B * S, H)).reshape(B, S, H)


# ------------------------- Demo / check -------------------------

if __name__ == "__main__":
    B, S, H = 2, 8, 128  # batch, seq, hidden (lane-dense: H multiple of 128)
    key = jax.random.PRNGKey(0)
    kx, kg, kb, kw, kbias = jax.random.split(key, 5)

    x = jax.random.normal(kx, (B, S, H), dtype=jnp.float32)

    # LayerNorm params (module init: ones / zeros; perturbed to exercise affine).
    gamma = jnp.ones((H,), jnp.float32) + 0.1 * jax.random.normal(kg, (H,), jnp.float32)
    beta = 0.1 * jax.random.normal(kb, (H,), jnp.float32)

    # Example "sublayer": a deterministic Linear(H, H).
    w = 0.05 * jax.random.normal(kw, (H, H), dtype=jnp.float32)
    bias = 0.05 * jax.random.normal(kbias, (H,), dtype=jnp.float32)

    # Pure-JAX reference (torch semantics: unbiased std, eps added to std).
    mean = jnp.mean(x, axis=-1, keepdims=True)
    diff = x - mean
    std = jnp.sqrt(jnp.sum(diff * diff, axis=-1, keepdims=True) / (H - 1))
    normed_ref = gamma * diff / (std + EPS) + beta
    y_ref = normed_ref.reshape(B * S, H) @ w + bias
    ref = x + y_ref.reshape(B, S, H)

    # 1) Fully fused fast path (LN + matmul + bias + residual in one kernel).
    out_fused = sublayer_connection_dense(x, w, bias, gamma, beta)
    out_fused = jax.block_until_ready(out_fused)
    assert out_fused.shape == (B, S, H)
    assert jnp.allclose(out_fused, ref, atol=1e-3, rtol=1e-3), "fused path mismatch"

    # 2) Separate LN kernel + K-tiled matmul with residual fused in the epilogue.
    normed = layer_norm(x.reshape(B * S, H), gamma, beta)
    out_tiled = linear_residual(normed, w, bias, x.reshape(B * S, H)).reshape(B, S, H)
    out_tiled = jax.block_until_ready(out_tiled)
    assert jnp.allclose(out_tiled, ref, atol=1e-3, rtol=1e-3), "tiled path mismatch"

    # 3) Generic path with an arbitrary sublayer callable + index glue.
    def sublayer_fn(z):
        return (z.reshape(B * S, H) @ w + bias).reshape(B, S, H), jnp.sum(z)

    out_idx, aux = sublayer_connection(x, sublayer_fn, gamma, beta, index=0)
    out_idx = jax.block_until_ready(out_idx)
    assert jnp.allclose(out_idx, ref, atol=1e-3, rtol=1e-3), "index path mismatch"

    print("KERNEL_OK")
</pallas_src>

<mosaic_0001>
module attributes {stable_mosaic.version = 11 : i64} {
  func.func @ln_linear_residual_kernel(%arg0: i32, %arg1: i32, %arg2: memref<16x128xf32, #tpu.memory_space<vmem>>, %arg3: memref<1x128xf32, #tpu.memory_space<vmem>>, %arg4: memref<1x128xf32, #tpu.memory_space<vmem>>, %arg5: memref<128x128xf32, #tpu.memory_space<vmem>>, %arg6: memref<1x128xf32, #tpu.memory_space<vmem>>, %arg7: memref<16x128xf32, #tpu.memory_space<vmem>>, %arg8: memref<16x128xf32, #tpu.memory_space<vmem>>) attributes {dimension_semantics = [#tpu.dimension_semantics<parallel>, #tpu.dimension_semantics<parallel>], iteration_bounds = array<i64: 1, 1>, scalar_prefetch = 0 : i64, scratch_operands = 0 : i64, tpu.core_type = #tpu.core_type<tc>, window_params = [{transform_indices = @transform_0, window_bounds = array<i64: 16, 128>}, {pipeline_mode = #tpu.pipeline_mode<synchronous>, transform_indices = @transform_1, window_bounds = array<i64: 1, 128>}, {pipeline_mode = #tpu.pipeline_mode<synchronous>, transform_indices = @transform_2, window_bounds = array<i64: 1, 128>}, {transform_indices = @transform_3, window_bounds = array<i64: 128, 128>}, {transform_indices = @transform_4, window_bounds = array<i64: 1, 128>}, {transform_indices = @transform_5, window_bounds = array<i64: 16, 128>}, {transform_indices = @transform_6, window_bounds = array<i64: 16, 128>}]} {
    %c0 = arith.constant 0 : index
    %c0_0 = arith.constant 0 : index
    %0 = vector.load %arg2[%c0, %c0_0] : memref<16x128xf32, #tpu.memory_space<vmem>>, vector<16x128xf32>
    %c0_1 = arith.constant 0 : index
    %c0_2 = arith.constant 0 : index
    %1 = vector.load %arg3[%c0_1, %c0_2] : memref<1x128xf32, #tpu.memory_space<vmem>>, vector<1x128xf32>
    %c0_3 = arith.constant 0 : index
    %c0_4 = arith.constant 0 : index
    %2 = vector.load %arg4[%c0_3, %c0_4] : memref<1x128xf32, #tpu.memory_space<vmem>>, vector<1x128xf32>
    %cst = arith.constant dense<0.000000e+00> : vector<16xf32>
    %3 = vector.multi_reduction <add>, %0, %cst [1] : vector<16x128xf32> to vector<16xf32>
    %4 = vector.shape_cast %3 : vector<16xf32> to vector<16x1xf32>
    %cst_5 = arith.constant 1.280000e+02 : f32
    %5 = vector.broadcast %cst_5 : f32 to vector<16x1xf32>
    %6 = arith.divf %4, %5 : vector<16x1xf32>
    %7 = vector.broadcast %6 : vector<16x1xf32> to vector<16x128xf32>
    %8 = arith.subf %0, %7 : vector<16x128xf32>
    %9 = arith.mulf %8, %8 : vector<16x128xf32>
    %cst_6 = arith.constant dense<0.000000e+00> : vector<16xf32>
    %10 = vector.multi_reduction <add>, %9, %cst_6 [1] : vector<16x128xf32> to vector<16xf32>
    %11 = vector.shape_cast %10 : vector<16xf32> to vector<16x1xf32>
    %cst_7 = arith.constant 0.00787401571 : f32
    %12 = vector.broadcast %cst_7 : f32 to vector<16x1xf32>
    %13 = arith.mulf %11, %12 : vector<16x1xf32>
    %14 = math.sqrt %13 : vector<16x1xf32>
    %cst_8 = arith.constant 9.99999997E-7 : f32
    %15 = vector.broadcast %cst_8 : f32 to vector<16x1xf32>
    %16 = arith.addf %14, %15 : vector<16x1xf32>
    %17 = tpu.reciprocal %16 : vector<16x1xf32> -> vector<16x1xf32>
    %18 = vector.broadcast %17 : vector<16x1xf32> to vector<16x128xf32>
    %19 = arith.mulf %8, %18 : vector<16x128xf32>
    %20 = vector.broadcast %1 : vector<1x128xf32> to vector<16x128xf32>
    %21 = arith.mulf %20, %19 : vector<16x128xf32>
    %22 = vector.broadcast %2 : vector<1x128xf32> to vector<16x128xf32>
    %23 = arith.addf %21, %22 : vector<16x128xf32>
    %c0_9 = arith.constant 0 : index
    %c0_10 = arith.constant 0 : index
    %24 = vector.load %arg5[%c0_9, %c0_10] : memref<128x128xf32, #tpu.memory_space<vmem>>, vector<128x128xf32>
    %cst_11 = arith.constant dense<0.000000e+00> : vector<16x128xf32>
    %25 = tpu.matmul %23, %24, %cst_11 {dimension_numbers = #tpu.dot_dimension_numbers<[1], [0], [0], [1], [0, 0, 1, 1], [], []>} : vector<16x128xf32>, vector<128x128xf32>, vector<16x128xf32> -> vector<16x128xf32>
    %c0_12 = arith.constant 0 : index
    %c0_13 = arith.constant 0 : index
    %26 = vector.load %arg6[%c0_12, %c0_13] : memref<1x128xf32, #tpu.memory_space<vmem>>, vector<1x128xf32>
    %27 = vector.broadcast %26 : vector<1x128xf32> to vector<16x128xf32>
    %28 = arith.addf %25, %27 : vector<16x128xf32>
    %c0_14 = arith.constant 0 : index
    %c0_15 = arith.constant 0 : index
    %29 = vector.load %arg7[%c0_14, %c0_15] : memref<16x128xf32, #tpu.memory_space<vmem>>, vector<16x128xf32>
    %30 = arith.addf %28, %29 : vector<16x128xf32>
    %c0_16 = arith.constant 0 : index
    %c0_17 = arith.constant 0 : index
    %31 = vector.load %arg8[%c0_16, %c0_17] : memref<16x128xf32, #tpu.memory_space<vmem>>, vector<16x128xf32>
    tpu.vector_store %arg8[%c0_16, %c0_17], %30 {strides = array<i32>} : memref<16x128xf32, #tpu.memory_space<vmem>>, vector<16x128xf32>,
    return
  }
  func.func @transform_0(%arg0: i32, %arg1: i32) -> (i32, i32) {
    %c0_i32 = arith.constant 0 : i32
    %c0_i32_0 = arith.constant 0 : i32
    return %arg0, %c0_i32 : i32, i32
  }
  func.func @transform_1(%arg0: i32, %arg1: i32) -> (i32, i32) {
    %c0_i32 = arith.constant 0 : i32
    %c0_i32_0 = arith.constant 0 : i32
    %c0_i32_1 = arith.constant 0 : i32
    return %c0_i32, %c0_i32_0 : i32, i32
  }
  func.func @transform_2(%arg0: i32, %arg1: i32) -> (i32, i32) {
    %c0_i32 = arith.constant 0 : i32
    %c0_i32_0 = arith.constant 0 : i32
    %c0_i32_1 = arith.constant 0 : i32
    return %c0_i32, %c0_i32_0 : i32, i32
  }
  func.func @transform_3(%arg0: i32, %arg1: i32) -> (i32, i32) {
    %c0_i32 = arith.constant 0 : i32
    %c0_i32_0 = arith.constant 0 : i32
    return %c0_i32, %arg1 : i32, i32
  }
  func.func @transform_4(%arg0: i32, %arg1: i32) -> (i32, i32) {
    %c0_i32 = arith.constant 0 : i32
    %c0_i32_0 = arith.constant 0 : i32
    return %c0_i32, %arg1 : i32, i32
  }
  func.func @transform_5(%arg0: i32, %arg1: i32) -> (i32, i32) {
    %c0_i32 = arith.constant 0 : i32
    return %arg0, %arg1 : i32, i32
  }
  func.func @transform_6(%arg0: i32, %arg1: i32) -> (i32, i32) {
    %c0_i32 = arith.constant 0 : i32
    return %arg0, %arg1 : i32, i32
  }
}

</mosaic_0001>

<llo_original>
// kernel: tpu_custom_call.1
$region0: #{tpu_custom_call.1}
  #allocation0 [shape = 'u32[]', space=smem, size = 0x4, offset = 0x4, fixed_abs, tag = 'smem constant byte address 0x4 - core index']
  #allocation1 [shape = 'u32[144,128]{1,0:T(1,128)}', space=vmem, size = 0x12000, scoped, tag = 'internal scratch']
  %s0 = inlined_call_operand.hbm [shape: f32[16,128], index: 0, kind: input, shape index: {}]
  %s1 = inlined_call_operand.vmem [shape: f32[1,128], index: 1, kind: input, shape index: {}]
  %s2 = inlined_call_operand.vmem [shape: f32[1,128], index: 2, kind: input, shape index: {}]
  %s3 = inlined_call_operand.hbm [shape: f32[128,128], index: 3, kind: input, shape index: {}]
  %s4 = inlined_call_operand.hbm [shape: f32[1,128], index: 4, kind: input, shape index: {}]
  %s5 = inlined_call_operand.vmem [shape: f32[16,128], index: 5, kind: input, shape index: {}]
  %s6 = inlined_call_operand.hbm [shape: f32[16,128], index: 6, kind: output, shape index: {}]
  %s7 = sld [smem:[#allocation0]]
  $region46: #{tpu_custom_call.1} parent=0
    _
  %s9 = ssub.s32 1, %s7
  %s10 = scalar_select 0, %s9, %s7
  $region1: #{tpu_custom_call.1} parent=0
    #allocation2 [shape = 'u8[8192]{0}', space=vmem, size = 0x2000, scoped, tag = 'input window, operand 0, single buffered']
    #allocation3 [shape = 's32[1]{0}', space=sflag, size = 0x4, scoped, tag = 'scoped memory for tpu_custom_call.1']
    #allocation4 [shape = 's32[1]{0}', space=sflag, size = 0x4, scoped, tag = 'scoped memory for tpu_custom_call.1']
    #allocation5 [shape = 'u8[65536]{0}', space=vmem, size = 0x10000, scoped, tag = 'input window, operand 3, single buffered']
    #allocation6 [shape = 's32[1]{0}', space=sflag, size = 0x4, scoped, tag = 'scoped memory for tpu_custom_call.1']
    #allocation7 [shape = 'u8[512]{0}', space=vmem, size = 0x400, scoped, tag = 'input window, operand 4, single buffered']
    #allocation8 [shape = 'u8[8192]{0}', space=vmem, size = 0x2000, scoped, tag = 'output window, operand 0, single buffered']
    %11 = vsyncpa [#allocation3], 0
    %12 = vsyncpa [#allocation6], 0
    %13 = vsyncpa [#allocation4], 0
    // Predicated region
    $region2: #{tpu_custom_call.1} parent=1 // pred_check
      _
    $region3: #{tpu_custom_call.1} parent=1 // pred_check_branch
      %15 = sbr.rel (0) target = $region5
    $region4: #{tpu_custom_call.1} parent=1 // pred_region
      %s17 = ssub.s32 256, 256
      %18 = vsyncadd [#allocation3], %s17
      %s19 = sshll.u32 [#allocation2], 4
      %s20 = int_to_ptr.vmem [resolvable:$true] %s19
      %25 = dma.hbm_to_vmem [thread:$0]  %s0, 256, %s20, [#allocation3], 128, 128, 8
    $region5: #{tpu_custom_call.1} parent=1 // pred_fallthru
      _
    // Predicated region
    $region6: #{tpu_custom_call.1} parent=1 // pred_check
      _
    $region7: #{tpu_custom_call.1} parent=1 // pred_check_branch
      %27 = sbr.rel (0) target = $region9
    $region8: #{tpu_custom_call.1} parent=1 // pred_region
      _
    $region9: #{tpu_custom_call.1} parent=1 // pred_fallthru
      _
    // Predicated region
    $region10: #{tpu_custom_call.1} parent=1 // pred_check
      _
    $region11: #{tpu_custom_call.1} parent=1 // pred_check_branch
      %29 = sbr.rel (0) target = $region13
    $region12: #{tpu_custom_call.1} parent=1 // pred_region
      _
    $region13: #{tpu_custom_call.1} parent=1 // pred_fallthru
      _
    // Predicated region
    $region14: #{tpu_custom_call.1} parent=1 // pred_check
      _
    $region15: #{tpu_custom_call.1} parent=1 // pred_check_branch
      %31 = sbr.rel (0) target = $region17
    $region16: #{tpu_custom_call.1} parent=1 // pred_region
      %s33 = ssub.s32 2048, 2048
      %34 = vsyncadd [#allocation6], %s33
      %s35 = sshll.u32 [#allocation5], 4
      %s36 = int_to_ptr.vmem [resolvable:$true] %s35
      %41 = dma.hbm_to_vmem [thread:$0]  %s3, 2048, %s36, [#allocation6], 128, 128, 8
    $region17: #{tpu_custom_call.1} parent=1 // pred_fallthru
      _
    // Predicated region
    $region18: #{tpu_custom_call.1} parent=1 // pred_check
      _
    $region19: #{tpu_custom_call.1} parent=1 // pred_check_branch
      %43 = sbr.rel (0) target = $region21
    $region20: #{tpu_custom_call.1} parent=1 // pred_region
      %s45 = ssub.s32 16, 16
      %46 = vsyncadd [#allocation6], %s45
      %s48 = sshll.u32 [#allocation7], 4
      %s49 = int_to_ptr.vmem [resolvable:$true] %s48
      %51 = dma.hbm_to_vmem [thread:$0]  %s4, 16, %s49, [#allocation6]
    $region21: #{tpu_custom_call.1} parent=1 // pred_fallthru
      _
    // Predicated region
    $region22: #{tpu_custom_call.1} parent=1 // pred_check
      _
    $region23: #{tpu_custom_call.1} parent=1 // pred_check_branch
      %53 = sbr.rel (0) target = $region25
    $region24: #{tpu_custom_call.1} parent=1 // pred_region
      _
    $region25: #{tpu_custom_call.1} parent=1 // pred_fallthru
      _
    // Predicated region
    $region26: #{tpu_custom_call.1} parent=1 // pred_check
      _
    $region27: #{tpu_custom_call.1} parent=1 // pred_check_branch
      %55 = sbr.rel (0) target = $region29
    $region28: #{tpu_custom_call.1} parent=1 // pred_region
      %56 = dma.done [#allocation3], 256
    $region29: #{tpu_custom_call.1} parent=1 // pred_fallthru
      _
    // Predicated region
    $region30: #{tpu_custom_call.1} parent=1 // pred_check
      _
    $region31: #{tpu_custom_call.1} parent=1 // pred_check_branch
      %58 = sbr.rel (0) target = $region33
    $region32: #{tpu_custom_call.1} parent=1 // pred_region
      %59 = dma.done [#allocation6], 2048
    $region33: #{tpu_custom_call.1} parent=1 // pred_fallthru
      _
    // Predicated region
    $region34: #{tpu_custom_call.1} parent=1 // pred_check
      _
    $region35: #{tpu_custom_call.1} parent=1 // pred_check_branch
      %61 = sbr.rel (0) target = $region37
    $region36: #{tpu_custom_call.1} parent=1 // pred_region
      %62 = dma.done [#allocation6], 16
    $region37: #{tpu_custom_call.1} parent=1 // pred_fallthru
      _
    %v63 = vld [vmem:[#allocation2] sm:$0xff]
    %v64 = vld [vmem:[#allocation2 + $0x8] sm:$0xff]
    %v65 = vld [vmem:[%s1] sm:$0x1]
    %v66 = vld [vmem:[%s2] sm:$0x1]
    %67 = vadd.xlane.f32.xlu0 %v63
    %v68 = vpop.xlane.xlu0 %67
    %69 = vadd.xlane.f32.xlu0 %v64
    %v70 = vpop.xlane.xlu0 %69
    %v71 = vrcp.pop 128.0
    %v72 = vmul.f32 %v68, %v71
    %v73 = vmul.f32 %v70, %v71
    %v74 = vsub.f32 %v63, %v72
    %v75 = vsub.f32 %v64, %v73
    %v76 = vmul.f32 %v74, %v74
    %v77 = vmul.f32 %v75, %v75
    %78 = vadd.xlane.f32.xlu0 %v76
    %v79 = vpop.xlane.xlu0 %78
    %80 = vadd.xlane.f32.xlu0 %v77
    %v81 = vpop.xlane.xlu0 %80
    %v82 = vmul.f32 %v79, 0.007874016
    %v83 = vmul.f32 %v81, 0.007874016
    %v84 = vrsqrt.pop %v82
    %v85 = vmul.f32 %v82, %v84
    %vm86 = vcmp.eq.f32.partialorder %v82, inf
    %v87 = vsel %vm86, %v82, %v85
    %vm88 = vcmp.eq.f32.partialorder %v82, 0.0
    %v89 = vand.u32 %v82, 2147483648
    %v90 = vsel %vm88, %v89, %v87
    %v91 = vrsqrt.pop %v83
    %v92 = vmul.f32 %v83, %v91
    %vm93 = vcmp.eq.f32.partialorder %v83, inf
    %v94 = vsel %vm93, %v83, %v92
    %vm95 = vcmp.eq.f32.partialorder %v83, 0.0
    %v96 = vand.u32 %v83, 2147483648
    %v97 = vsel %vm95, %v96, %v94
    %v98 = vadd.f32 %v90, 1e-06
    %v99 = vadd.f32 %v97, 1e-06
    %v100 = vrcp.pop %v98
    %v101 = vrcp.pop %v99
    %v102 = vmul.f32 %v74, %v100
    %v103 = vmul.f32 %v75, %v101
    %v105 = vlaneseq
    %v106 = vshrl.u32 %v105, 7
    %v107 = vsub.s32 0, %v106
    %v108 = vrot.slane %v65, %v107
    %v110 = vmul.f32 %v108, %v102
    %v111 = vmul.f32 %v108, %v103
    %v113 = vlaneseq
    %v114 = vshrl.u32 %v113, 7
    %v115 = vsub.s32 0, %v114
    %v116 = vrot.slane %v66, %v115
    %v118 = vadd.f32 %v110, %v116
    %v119 = vadd.f32 %v111, %v116
    %v120 = vld [vmem:[#allocation5] sm:$0xff]
    %v121 = vld [vmem:[#allocation5 + $0x8] sm:$0xff]
    %v122 = vld [vmem:[#allocation5 + $0x10] sm:$0xff]
    %v123 = vld [vmem:[#allocation5 + $0x18] sm:$0xff]
    %v124 = vld [vmem:[#allocation5 + $0x20] sm:$0xff]
    %v125 = vld [vmem:[#allocation5 + $0x28] sm:$0xff]
    %v126 = vld [vmem:[#allocation5 + $0x30] sm:$0xff]
    %v127 = vld [vmem:[#allocation5 + $0x38] sm:$0xff]
    %v128 = vld [vmem:[#allocation5 + $0x40] sm:$0xff]
    %v129 = vld [vmem:[#allocation5 + $0x48] sm:$0xff]
    %v130 = vld [vmem:[#allocation5 + $0x50] sm:$0xff]
    %v131 = vld [vmem:[#allocation5 + $0x58] sm:$0xff]
    %v132 = vld [vmem:[#allocation5 + $0x60] sm:$0xff]
    %v133 = vld [vmem:[#allocation5 + $0x68] sm:$0xff]
    %v134 = vld [vmem:[#allocation5 + $0x70] sm:$0xff]
    %v135 = vld [vmem:[#allocation5 + $0x78] sm:$0xff]
    %v136 = vld [vmem:[#allocation7] sm:$0x1]
    %v138 = vlaneseq
    %v139 = vshrl.u32 %v138, 7
    %v140 = vsub.s32 0, %v139
    %v141 = vrot.slane %v136, %v140
    %143 = vmatprep.subr.mxu0 0.0
    %144 = vmatpush1.msra.mxu0 %v120
    %145 = vmatprep.subr.mxu0 0.0
    %146 = vmatpush1.msra.mxu0 %v121
    %147 = vmatprep.subr.mxu0 0.0
    %148 = vmatpush1.msra.mxu0 %v122
    %149 = vmatprep.subr.mxu0 0.0
    %150 = vmatpush1.msra.mxu0 %v123
    %151 = vmatprep.subr.mxu0 0.0
    %152 = vmatpush1.msra.mxu0 %v124
    %153 = vmatprep.subr.mxu0 0.0
    %154 = vmatpush1.msra.mxu0 %v125
    %155 = vmatprep.subr.mxu0 0.0
    %156 = vmatpush1.msra.mxu0 %v126
    %157 = vmatprep.subr.mxu0 0.0
    %158 = vmatpush1.msra.mxu0 %v127
    %159 = vmatprep.subr.mxu0 0.0
    %160 = vmatpush1.msra.mxu0 %v128
    %161 = vmatprep.subr.mxu0 0.0
    %162 = vmatpush1.msra.mxu0 %v129
    %163 = vmatprep.subr.mxu0 0.0
    %164 = vmatpush1.msra.mxu0 %v130
    %165 = vmatprep.subr.mxu0 0.0
    %166 = vmatpush1.msra.mxu0 %v131
    %167 = vmatprep.subr.mxu0 0.0
    %168 = vmatpush1.msra.mxu0 %v132
    %169 = vmatprep.subr.mxu0 0.0
    %170 = vmatpush1.msra.mxu0 %v133
    %171 = vmatprep.subr.mxu0 0.0
    %172 = vmatpush1.msra.mxu0 %v134
    %173 = vmatprep.subr.mxu0 0.0
    %174 = vmatpush1.msra.mxu0 %v135
    %175 = vmatprep.subr.mxu0 0.0
    %176 = vmatpush1.msra.mxu0 0.0
    %177 = vmatprep.subr.mxu0 0.0
    %178 = vmatpush1.msra.mxu0 0.0
    %179 = vmatprep.subr.mxu0 0.0
    %180 = vmatpush1.msra.mxu0 0.0
    %181 = vmatprep.subr.mxu0 0.0
    %182 = vmatpush1.msra.mxu0 0.0
    %183 = vmatprep.subr.mxu0 0.0
    %184 = vmatpush1.msra.mxu0 0.0
    %185 = vmatprep.subr.mxu0 0.0
    %186 = vmatpush1.msra.mxu0 0.0
    %187 = vmatprep.subr.mxu0 0.0
    %188 = vmatpush1.msra.mxu0 0.0
    %189 = vmatprep.subr.mxu0 0.0
    %190 = vmatpush1.msra.mxu0 0.0
    %191 = vmatprep.subr.mxu0 0.0
    %192 = vmatpush1.msra.mxu0 0.0
    %193 = vmatprep.subr.mxu0 0.0
    %194 = vmatpush1.msra.mxu0 0.0
    %195 = vmatprep.subr.mxu0 0.0
    %196 = vmatpush1.msra.mxu0 0.0
    %197 = vmatprep.subr.mxu0 0.0
    %198 = vmatpush1.msra.mxu0 0.0
    %199 = vmatprep.subr.mxu0 0.0
    %200 = vmatpush1.msra.mxu0 0.0
    %201 = vmatprep.subr.mxu0 0.0
    %202 = vmatpush1.msra.mxu0 0.0
    %203 = vmatprep.subr.mxu0 0.0
    %204 = vmatpush1.msra.mxu0 0.0
    %205 = vmatprep.subr.mxu0 0.0
    %206 = vmatpush1.msra.mxu0 0.0
    %207 = vmatprep.mubr.f32.mxu0 0.0
    %208 = vmatmul.mubr.f32.gmra.mrb[0].mxu0 %v118
    %v209 = vpop.f32.mrb[0].mxu0
    %v210 = vadd.f32 %v141, %v209
    %v211 = vpop.f32.mrb[0].mxu0
    %212 = vmatprep.mubr.f32.mxu0 0.0
    %213 = vmatmul.mubr.f32.gmra.mrb[0].mxu0 %v119
    %v214 = vpop.f32.mrb[0].mxu0
    %v215 = vadd.f32 %v141, %v214
    %v216 = vpop.f32.mrb[0].mxu0
    %217 = vdwg.mxu0
    %v218 = vld [vmem:[%s5] sm:$0xff]
    %v219 = vld [vmem:[%s5 + $0x8] sm:$0xff]
    %v220 = vadd.f32 %v210, %v218
    %v221 = vadd.f32 %v215, %v219
    %222 = vst [vmem:[#allocation8] sm:$0xff] %v220
    %223 = vst [vmem:[#allocation8 + $0x8] sm:$0xff] %v221
    // Predicated region
    $region38: #{tpu_custom_call.1} parent=1 // pred_check
      _
    $region39: #{tpu_custom_call.1} parent=1 // pred_check_branch
      %225 = sbr.rel (0) target = $region41
    $region40: #{tpu_custom_call.1} parent=1 // pred_region
      %s227 = ssub.s32 256, 256
      %228 = vsyncadd [#allocation4], %s227
      %s229 = sshll.u32 [#allocation8], 4
      %s230 = int_to_ptr.vmem [resolvable:$true] %s229
      %235 = dma.vmem_to_hbm [thread:$0]  %s230, 256, %s6, [#allocation4], 128, 128, 8
    $region41: #{tpu_custom_call.1} parent=1 // pred_fallthru
      _
    // Predicated region
    $region42: #{tpu_custom_call.1} parent=1 // pred_check
      _
    $region43: #{tpu_custom_call.1} parent=1 // pred_check_branch
      %237 = sbr.rel (0) target = $region45
    $region44: #{tpu_custom_call.1} parent=1 // pred_region
      %238 = dma.done [#allocation4], 256
    $region45: #{tpu_custom_call.1} parent=1 // pred_fallthru
      _
    %239 = vsyncpa [#allocation3], 1
    %240 = vsyncpa [#allocation6], 1
    %241 = vsyncpa [#allocation4], 1

</llo_original>
